<compile_context>
chip_gen: v5e
topology: v5e:2x2
jax: 0.10.0
libtpu: 0.0.40
codegen_flags: <defaults>
</compile_context>

<pallas_src>
import jax
import jax.numpy as jnp
from jax.experimental import pallas as pl
from jax.experimental.pallas import tpu as pltpu


def _pool_kernel(x_ref, s_ref, o_ref):
    # x_ref: (TM, K), s_ref: (K, Wout), o_ref: (TM, Wout)
    o_ref[...] = jnp.dot(
        x_ref[...], s_ref[...], preferred_element_type=jnp.float32
    ).astype(o_ref.dtype)


def _choose_tm(M, K, Wout, itemsize, vmem_budget_bytes=8 * 1024 * 1024):
    """Largest row-tile (multiple of 8, capped at 1024) whose double-buffered
    input + output blocks fit a conservative VMEM budget."""
    per_row = 2 * (K + Wout) * itemsize  # 2x for double buffering
    tm = vmem_budget_bytes // max(per_row, 1)
    tm = max(8, min(1024, (tm // 8) * 8))
    return M if M <= tm else tm


def _strided_select_matmul(x2d, sel, *, tm):
    M, K = x2d.shape
    Wout = sel.shape[1]
    itemsize = x2d.dtype.itemsize
    return pl.pallas_call(
        _pool_kernel,
        out_shape=jax.ShapeDtypeStruct((M, Wout), x2d.dtype),
        grid_spec=pltpu.PrefetchScalarGridSpec(
            num_scalar_prefetch=0,
            grid=(pl.cdiv(M, tm),),
            in_specs=[
                pl.BlockSpec((tm, K), lambda i: (i, 0)),
                pl.BlockSpec((K, Wout), lambda i: (0, 0)),  # resident selection matrix
            ],
            out_specs=pl.BlockSpec((tm, Wout), lambda i: (i, 0)),
        ),
        compiler_params=pltpu.CompilerParams(dimension_semantics=("parallel",)),
        cost_estimate=pl.CostEstimate(
            flops=2 * M * K * Wout,
            transcendentals=0,
            bytes_accessed=(M * K + K * Wout + M * Wout) * itemsize,
        ),
    )(x2d, sel)


def fixed_pooling_forward(x_nchw, *, scale=2):
    """Equivalent of FixedPooling.forward (the module hardcodes scale=2).

    x_nchw: (N, C, H, W)
    returns: (y, y, 0) with y = x[:, :, scale-1::scale, scale-1::scale]
    """
    N, C, H, W = x_nchw.shape
    Hout, Wout = H // scale, W // scale

    # Trim unused trailing rows if H is not a multiple of scale (no-op otherwise),
    # then group `scale` consecutive rows per flat row -- both metadata-only.
    x = x_nchw[:, :, : Hout * scale, :]
    M = N * C * Hout
    K = scale * W
    x2d = x.reshape(M, K)

    # Constant 0/1 selection matrix: output column j <- flat column
    # (scale-1)*W + scale*j + (scale-1)  (picks row-parity and column-parity scale-1).
    cols = (scale - 1) * W + scale * jnp.arange(Wout) + (scale - 1)
    sel = (jnp.arange(K)[:, None] == cols[None, :]).astype(x2d.dtype)

    tm = _choose_tm(M, K, Wout, x2d.dtype.itemsize)
    y2d = _strided_select_matmul(x2d, sel, tm=tm)
    y = y2d.reshape(N, C, Hout, Wout)

    # FixedPooling.forward returns the pooled tensor twice plus the integer 0.
    return (y, y, 0)


if __name__ == "__main__":
    key = jax.random.PRNGKey(0)
    N, C, H, W = 2, 4, 16, 16
    x = jax.random.normal(key, (N, C, H, W), dtype=jnp.float32)

    y, y_again, flag = fixed_pooling_forward(x)
    jax.block_until_ready(y)

    # Reference: plain strided slicing, identical to the PyTorch forward.
    y_ref = x[:, :, 1::2, 1::2]
    assert y.shape == (N, C, H // 2, W // 2)
    assert y_again is y and flag == 0
    assert jnp.allclose(y, y_ref, atol=1e-5, rtol=1e-5)

    print("KERNEL_OK")
</pallas_src>

<mosaic_0001>
module attributes {stable_mosaic.version = 11 : i64} {
  func.func @_pool_kernel(%arg0: i32, %arg1: memref<64x32xf32, #tpu.memory_space<vmem>>, %arg2: memref<32x8xf32, #tpu.memory_space<vmem>>, %arg3: memref<64x8xf32, #tpu.memory_space<vmem>>) attributes {dimension_semantics = [#tpu.dimension_semantics<parallel>], iteration_bounds = array<i64: 1>, scalar_prefetch = 0 : i64, scratch_operands = 0 : i64, tpu.core_type = #tpu.core_type<tc>, window_params = [{transform_indices = @transform_0, window_bounds = array<i64: 64, 32>}, {pipeline_mode = #tpu.pipeline_mode<synchronous>, transform_indices = @transform_1, window_bounds = array<i64: 32, 8>}, {transform_indices = @transform_2, window_bounds = array<i64: 64, 8>}]} {
    %c0 = arith.constant 0 : index
    %c0_0 = arith.constant 0 : index
    %0 = vector.load %arg1[%c0, %c0_0] : memref<64x32xf32, #tpu.memory_space<vmem>>, vector<64x32xf32>
    %c0_1 = arith.constant 0 : index
    %c0_2 = arith.constant 0 : index
    %1 = vector.load %arg2[%c0_1, %c0_2] : memref<32x8xf32, #tpu.memory_space<vmem>>, vector<32x8xf32>
    %cst = arith.constant dense<0.000000e+00> : vector<64x8xf32>
    %2 = tpu.matmul %0, %1, %cst {dimension_numbers = #tpu.dot_dimension_numbers<[1], [0], [0], [1], [0, 0, 1, 1], [], []>} : vector<64x32xf32>, vector<32x8xf32>, vector<64x8xf32> -> vector<64x8xf32>
    %c0_3 = arith.constant 0 : index
    %c0_4 = arith.constant 0 : index
    %3 = vector.load %arg3[%c0_3, %c0_4] : memref<64x8xf32, #tpu.memory_space<vmem>>, vector<64x8xf32>
    tpu.vector_store %arg3[%c0_3, %c0_4], %2 {strides = array<i32>} : memref<64x8xf32, #tpu.memory_space<vmem>>, vector<64x8xf32>,
    return
  }
  func.func @transform_0(%arg0: i32) -> (i32, i32) {
    %c0_i32 = arith.constant 0 : i32
    %c0_i32_0 = arith.constant 0 : i32
    return %arg0, %c0_i32 : i32, i32
  }
  func.func @transform_1(%arg0: i32) -> (i32, i32) {
    %c0_i32 = arith.constant 0 : i32
    %c0_i32_0 = arith.constant 0 : i32
    %c0_i32_1 = arith.constant 0 : i32
    return %c0_i32, %c0_i32_0 : i32, i32
  }
  func.func @transform_2(%arg0: i32) -> (i32, i32) {
    %c0_i32 = arith.constant 0 : i32
    %c0_i32_0 = arith.constant 0 : i32
    return %arg0, %c0_i32 : i32, i32
  }
}

</mosaic_0001>

<llo_original>
// kernel: tpu_custom_call.1
$region0: #{tpu_custom_call.1}
  #allocation0 [shape = 'u32[]', space=smem, size = 0x4, offset = 0x4, fixed_abs, tag = 'smem constant byte address 0x4 - core index']
  #allocation1 [shape = 'u32[72,128]{1,0:T(1,128)}', space=vmem, size = 0x9000, scoped, tag = 'internal scratch']
  %s0 = inlined_call_operand.vmem [shape: f32[64,32], index: 0, kind: input, shape index: {}]
  %s1 = inlined_call_operand.vmem [shape: f32[32,8], index: 1, kind: input, shape index: {}]
  %s2 = inlined_call_operand.vmem [shape: f32[64,8], index: 2, kind: output, shape index: {}]
  %s3 = sld [smem:[#allocation0]]
  $region18: #{tpu_custom_call.1} parent=0
    _
  %s5 = ssub.s32 1, %s3
  %s6 = scalar_select 0, %s5, %s3
  // Predicated region
  $region2: #{tpu_custom_call.1} parent=0 // pred_check
    _
  $region3: #{tpu_custom_call.1} parent=0 // pred_check_branch
    %8 = sbr.rel (0) target = $region5
  $region4: #{tpu_custom_call.1} parent=0 // pred_region
    _
  $region5: #{tpu_custom_call.1} parent=0 // pred_fallthru
    _
  // Predicated region
  $region6: #{tpu_custom_call.1} parent=0 // pred_check
    _
  $region7: #{tpu_custom_call.1} parent=0 // pred_check_branch
    %10 = sbr.rel (0) target = $region9
  $region8: #{tpu_custom_call.1} parent=0 // pred_region
    _
  $region9: #{tpu_custom_call.1} parent=0 // pred_fallthru
    _
  %v11 = vld [vmem:[%s0] sm:$0xff]
  %v12 = vld [vmem:[%s0 + $0x8] sm:$0xff]
  %v13 = vld [vmem:[%s0 + $0x10] sm:$0xff]
  %v14 = vld [vmem:[%s0 + $0x18] sm:$0xff]
  %v15 = vld [vmem:[%s0 + $0x20] sm:$0xff]
  %v16 = vld [vmem:[%s0 + $0x28] sm:$0xff]
  %v17 = vld [vmem:[%s0 + $0x30] sm:$0xff]
  %v18 = vld [vmem:[%s0 + $0x38] sm:$0xff]
  %v19 = vld [vmem:[%s1] sm:$0xff]
  %v20 = vld [vmem:[%s1 + $0x8] sm:$0xff]
  %v21 = vld [vmem:[%s1 + $0x10] sm:$0xff]
  %v22 = vld [vmem:[%s1 + $0x18] sm:$0xff]
  %vm23 = vcmask 261120
  %v25 = vsel %vm23, %v11, 0
  %v28 = vsel %vm23, %v12, 0
  %v31 = vsel %vm23, %v13, 0
  %v34 = vsel %vm23, %v14, 0
  %v37 = vsel %vm23, %v15, 0
  %v40 = vsel %vm23, %v16, 0
  %v43 = vsel %vm23, %v17, 0
  %v46 = vsel %vm23, %v18, 0
  %48 = vmatpush.msra.mxu0 0.0
  %49 = vmatpush.msra.mxu0 0.0
  %50 = vmatpush.msra.mxu0 0.0
  %51 = vmatpush.msra.mxu0 0.0
  %52 = vmatpush.msra.mxu0 0.0
  %53 = vmatpush.msra.mxu0 0.0
  %54 = vmatpush.msra.mxu0 0.0
  %55 = vmatpush.msra.mxu0 0.0
  %56 = vmatpush.msra.mxu0 0.0
  %57 = vmatpush.msra.mxu0 0.0
  %58 = vmatpush.msra.mxu0 0.0
  %59 = vmatpush.msra.mxu0 0.0
  %60 = vmatpush.msra.mxu0 %v22
  %61 = vmatpush.msra.mxu0 %v21
  %62 = vmatpush.msra.mxu0 %v20
  %63 = vmatpush.msra.mxu0 %v19
  %64 = vmatmul.f32.gmra.mxu0 %v25
  %v65 = vpop.f32.mrf.mxu0
  %v66 = vadd.f32 0.0, %v65
  %67 = vmatmul.f32.gmra.mxu0 %v28
  %v68 = vpop.f32.mrf.mxu0
  %v69 = vadd.f32 0.0, %v68
  %70 = vmatmul.f32.gmra.mxu0 %v31
  %v71 = vpop.f32.mrf.mxu0
  %v72 = vadd.f32 0.0, %v71
  %73 = vmatmul.f32.gmra.mxu0 %v34
  %v74 = vpop.f32.mrf.mxu0
  %v75 = vadd.f32 0.0, %v74
  %76 = vmatmul.f32.gmra.mxu0 %v37
  %v77 = vpop.f32.mrf.mxu0
  %v78 = vadd.f32 0.0, %v77
  %79 = vmatmul.f32.gmra.mxu0 %v40
  %v80 = vpop.f32.mrf.mxu0
  %v81 = vadd.f32 0.0, %v80
  %82 = vmatmul.f32.gmra.mxu0 %v43
  %v83 = vpop.f32.mrf.mxu0
  %v84 = vadd.f32 0.0, %v83
  %85 = vmatmul.f32.gmra.mxu0 %v46
  %v86 = vpop.f32.mrf.mxu0
  %v87 = vadd.f32 0.0, %v86
  %88 = vdwg.mxu0
  %vm89 = vcmask 64512
  %90 = vst.msk [vmem:[%s2] sm:$0xff] %vm89, %v66
  %91 = vst.msk [vmem:[%s2 + $0x8] sm:$0xff] %vm89, %v69
  %92 = vst.msk [vmem:[%s2 + $0x10] sm:$0xff] %vm89, %v72
  %93 = vst.msk [vmem:[%s2 + $0x18] sm:$0xff] %vm89, %v75
  %94 = vst.msk [vmem:[%s2 + $0x20] sm:$0xff] %vm89, %v78
  %95 = vst.msk [vmem:[%s2 + $0x28] sm:$0xff] %vm89, %v81
  %96 = vst.msk [vmem:[%s2 + $0x30] sm:$0xff] %vm89, %v84
  %97 = vst.msk [vmem:[%s2 + $0x38] sm:$0xff] %vm89, %v87
  // Predicated region
  $region10: #{tpu_custom_call.1} parent=0 // pred_check
    _
  $region11: #{tpu_custom_call.1} parent=0 // pred_check_branch
    %99 = sbr.rel (0) target = $region13
  $region12: #{tpu_custom_call.1} parent=0 // pred_region
    _
  $region13: #{tpu_custom_call.1} parent=0 // pred_fallthru
    _
  // Predicated region
  $region14: #{tpu_custom_call.1} parent=0 // pred_check
    _
  $region15: #{tpu_custom_call.1} parent=0 // pred_check_branch
    %101 = sbr.rel (0) target = $region17
  $region16: #{tpu_custom_call.1} parent=0 // pred_region
    _
  $region17: #{tpu_custom_call.1} parent=0 // pred_fallthru
    _

</llo_original>
